<compile_context>
chip_gen: v6e
topology: v6e:2x2x1
jax: 0.10.0
libtpu: 0.0.40
codegen_flags: <defaults>
</compile_context>

<pallas_src>
import math

import jax
import jax.numpy as jnp
from jax.experimental import pallas as pl
from jax.experimental.pallas import tpu as pltpu

# temporal decay mixture weights: exp(-4..-1) / sum
_E = [math.exp(-4.0), math.exp(-3.0), math.exp(-2.0), math.exp(-1.0)]
_SUM0 = sum(_E)
W1, W2, W3, W4 = (e / _SUM0 for e in _E)

_BN_EPS = 1e-5


# --------------------------------------------------------------------------
# Tower / MLP kernel.  Computes per-row scores, temporal consistency c and
# min item distance d_min.  When `fuse_finalize` (single batch tile) it also
# applies the batch-global min/max normalisation and writes ratings directly.
# --------------------------------------------------------------------------
def _make_mtge_kernel(D, L, P, fuse_finalize):
    D2 = 2 * D
    f32 = jnp.float32
    bf16 = jnp.bfloat16

    def kernel(eu1_ref, eu2_ref, eu3_ref, eu4_ref, ev_ref, nv_ref, ng_ref,
               w_ref, b_ref, out_ref):
        e1 = eu1_ref[...]
        e2 = eu2_ref[...]
        e3 = eu3_ref[...]
        e4 = eu4_ref[...]

        # temporal weighted combination of user embeddings (f32 VPU)
        embeds_u = e1 * W1 + e2 * W2 + e3 * W3 + e4 * W4          # (TB, D)
        embeds_v = ev_ref[...]                                     # (TB, D)

        # -------- towers + joint MLP; all matmuls full 128-lane width --------
        # (bf16 operands, f32 accumulation; eval-mode BatchNorm folded into W/b)
        wu1 = w_ref[0:D, :]                 # (D, P)   -> output lanes [0, D)
        wv1 = w_ref[D:D2, :]                # (D, P)   -> output lanes [D, 2D)
        wblk2 = w_ref[D2:D2 + P, :]         # (P, P)   block-diag(w_ur2, w_vr2)
        wuv1 = w_ref[D2 + P:D2 + 2 * P, :]  # (P, P)   w_uv1 in cols [0, D)
        wuv2 = w_ref[D2 + 2 * P:D2 + 3 * P, :]  # (P, P)  w_uv2 in cols [0, 16)

        # layer 1: relu(bn1(w_ur1 u)) | relu(bn2(w_vr1 v)), no lane concat needed
        h1 = jnp.maximum(
            jnp.dot(embeds_u.astype(bf16), wu1, preferred_element_type=f32)
            + jnp.dot(embeds_v.astype(bf16), wv1, preferred_element_type=f32)
            + b_ref[0:1, :], 0.0)                                   # (TB, P)
        # layer 2: [x_u | x_v] = h1 @ blockdiag(w_ur2, w_vr2) + [b_ur2 | b_vr2]
        x_uv = (jnp.dot(h1.astype(bf16), wblk2, preferred_element_type=f32)
                + b_ref[1:2, :])                                    # (TB, P)
        # joint MLP
        h = jnp.maximum(
            jnp.dot(x_uv.astype(bf16), wuv1, preferred_element_type=f32)
            + b_ref[2:3, :], 0.0)                                   # (TB, P)
        h = jnp.maximum(
            jnp.dot(h.astype(bf16), wuv2, preferred_element_type=f32)
            + b_ref[3:4, :], 0.0)                                   # (TB, P)
        # final 16 -> 1 layer as VPU multiply + lane reduction (padding is zero)
        scores = (jnp.sum(h * b_ref[4:5, :], axis=-1, keepdims=True)
                  + b_ref[5:6, 0:1])                                # (TB, 1)

        # -------- temporal consistency c_u --------
        def dist(a, b):
            d = a - b
            return jnp.sqrt(jnp.sum(d * d, axis=-1, keepdims=True))

        c_col = (dist(e1, e2) + dist(e2, e3) + dist(e3, e4)) * (1.0 / 3.0)

        # -------- min distance target item vs. history items --------
        # squared-distance min first, single sqrt per row, clamp vs 9999^2
        nv = nv_ref[...]                                            # (TB, D)
        ng = ng_ref[...]                                            # (TB, L*D)
        d2min = None
        for j in range(L):
            diff = ng[:, j * D:(j + 1) * D] - nv
            dsq = jnp.sum(diff * diff, axis=-1, keepdims=True)
            d2min = dsq if d2min is None else jnp.minimum(d2min, dsq)
        d2min = jnp.minimum(d2min, 9999.0 * 9999.0)
        dmin_col = jnp.sqrt(d2min)                                  # (TB, 1)

        if fuse_finalize:
            # whole batch in this tile -> batch-global min/max normalisation here
            d_lo = jnp.min(dmin_col)
            d_hi = jnp.max(dmin_col)
            i0 = d_hi - d_lo
            i0 = jnp.where(i0 == 0.0, 1.0, i0)        # NaN guard (degenerate batch)
            t = (dmin_col - d_lo) / i0
            unexp = 6.0 * t * jnp.exp(-6.0 * t)

            c_lo = jnp.min(c_col)
            c_hi = jnp.max(c_col)
            i1 = c_hi - c_lo
            i1 = jnp.where(i1 == 0.0, 1.0, i1)        # NaN guard
            c_norm = (c_col - c_lo) / i1

            out_ref[...] = scores + unexp * c_norm    # ratings (B, 1)
        else:
            # one lane-concatenated store instead of three 1-lane masked stores
            out_ref[...] = jnp.concatenate([scores, c_col, dmin_col], axis=-1)

    return kernel


def _pick_tb(b):
    # <=256 rows: one tile (whole batch easily fits VMEM, zero step overhead).
    # Larger batches: largest power-of-two tile <=1024 that leaves >=2 tiles,
    # so the 'parallel' grid axis keeps both v7x TensorCores busy while the
    # per-step overhead (~0.35us) stays negligible on single-TC v5e/v6e.
    if b <= 256:
        return b
    for tb in (1024, 512, 256, 128, 64, 32, 16, 8):
        if b % tb == 0 and b // tb >= 2:
            return tb
    return b


def mtge_forward(eu1, eu2, eu3, eu4, ev, newv, neigh, packed_params):
    """Returns ratings.squeeze()  ->  shape [B]."""
    wpack, bpack = packed_params
    B, D = ev.shape
    L = neigh.shape[1]
    P = wpack.shape[1]

    # free row-major collapse: (B, L, D) -> (B, L*D), lane-dense neighbor DMA
    neigh_flat = neigh.reshape(B, L * D)

    tb = _pick_tb(B)
    nb = B // tb
    fuse = nb == 1

    kernel = _make_mtge_kernel(D, L, P, fuse)

    data_specs = [
        pl.BlockSpec((tb, D), lambda i: (i, 0)),          # eu1
        pl.BlockSpec((tb, D), lambda i: (i, 0)),          # eu2
        pl.BlockSpec((tb, D), lambda i: (i, 0)),          # eu3
        pl.BlockSpec((tb, D), lambda i: (i, 0)),          # eu4
        pl.BlockSpec((tb, D), lambda i: (i, 0)),          # ev
        pl.BlockSpec((tb, D), lambda i: (i, 0)),          # new item embed
        pl.BlockSpec((tb, L * D), lambda i: (i, 0)),      # neighbor items (flat)
    ]
    param_specs = [
        pl.BlockSpec(wpack.shape, lambda i: (0, 0)),      # packed weights (resident)
        pl.BlockSpec(bpack.shape, lambda i: (0, 0)),      # packed biases  (resident)
    ]

    if fuse:
        out_shape = jax.ShapeDtypeStruct((B, 1), jnp.float32)
        out_spec = pl.BlockSpec((B, 1), lambda i: (0, 0))
    else:
        out_shape = jax.ShapeDtypeStruct((B, 3), jnp.float32)
        out_spec = pl.BlockSpec((tb, 3), lambda i: (i, 0))

    # advisory cost estimate (matmuls + elementwise, input/output bytes)
    flops = int(B * (4 * D * P + 6 * P * P + 40 * D))
    transcendentals = int(B * 6)
    bytes_accessed = int((6 * B * D + B * L * D) * 4
                         + wpack.size * 2 + bpack.size * 4 + B * 3 * 4)

    result = pl.pallas_call(
        kernel,
        out_shape=out_shape,
        grid=(nb,),
        in_specs=data_specs + param_specs,
        out_specs=out_spec,
        compiler_params=pltpu.CompilerParams(
            dimension_semantics=("parallel",)),
        cost_estimate=pl.CostEstimate(
            flops=flops,
            transcendentals=transcendentals,
            bytes_accessed=bytes_accessed),
    )(eu1, eu2, eu3, eu4, ev, newv, neigh_flat, wpack, bpack)

    if fuse:
        return result[:, 0]

    # Batch-global min/max normalisation epilogue in plain XLA (tiny, fuses
    # with surrounding ops; avoids a second pallas_call launch + HBM trip).
    scores = result[:, 0:1]
    c = result[:, 1:2]
    dmin = result[:, 2:3]

    d_lo = jnp.min(dmin)
    d_hi = jnp.max(dmin)
    i0 = d_hi - d_lo
    i0 = jnp.where(i0 == 0.0, 1.0, i0)
    t = (dmin - d_lo) / i0
    unexp = 6.0 * t * jnp.exp(-6.0 * t)

    c_lo = jnp.min(c)
    c_hi = jnp.max(c)
    i1 = c_hi - c_lo
    i1 = jnp.where(i1 == 0.0, 1.0, i1)
    c_norm = (c - c_lo) / i1

    ratings = scores + unexp * c_norm
    return ratings[:, 0]


# --------------------------------------------------------------------------
# Parameter construction / packing
# --------------------------------------------------------------------------
def _torch_linear_init(key, fan_in, fan_out):
    """nn.Linear default init: U(-1/sqrt(fan_in), 1/sqrt(fan_in)); W stored [in, out]."""
    kw, kb = jax.random.split(key)
    bound = 1.0 / math.sqrt(fan_in)
    w = jax.random.uniform(kw, (fan_in, fan_out), jnp.float32, -bound, bound)
    b = jax.random.uniform(kb, (1, fan_out), jnp.float32, -bound, bound)
    return w, b


def init_params(key, embed_dim):
    d = embed_dim
    assert d % 8 == 0 and d >= 16, "embed_dim must be a multiple of 8 and >= 16"
    d2 = 2 * d
    P = max(128, ((d2 + 127) // 128) * 128)   # full-lane pad width

    ks = jax.random.split(key, 7)
    w_ur1, b_ur1 = _torch_linear_init(ks[0], d, d)
    w_ur2, b_ur2 = _torch_linear_init(ks[1], d, d)
    w_vr1, b_vr1 = _torch_linear_init(ks[2], d, d)
    w_vr2, b_vr2 = _torch_linear_init(ks[3], d, d)
    w_uv1, b_uv1 = _torch_linear_init(ks[4], 2 * d, d)
    w_uv2, b_uv2 = _torch_linear_init(ks[5], d, 16)
    w_uv3, b_uv3 = _torch_linear_init(ks[6], 16, 1)

    # fold eval-mode BatchNorm (mean=0, var=1, gamma=1, beta=0) into preceding Linear
    s = 1.0 / math.sqrt(1.0 + _BN_EPS)
    w_ur1, b_ur1 = w_ur1 * s, b_ur1 * s        # bn1
    w_vr1, b_vr1 = w_vr1 * s, b_vr1 * s        # bn2
    w_uv1, b_uv1 = w_uv1 * s, b_uv1 * s        # bn3
    w_uv2, b_uv2 = w_uv2 * s, b_uv2 * s        # bn4

    # full-lane-width padded weight slab (zero padding keeps all layers exact)
    wu1 = jnp.zeros((d, P), jnp.float32).at[:, 0:d].set(w_ur1)
    wv1 = jnp.zeros((d, P), jnp.float32).at[:, d:d2].set(w_vr1)
    wblk2 = (jnp.zeros((P, P), jnp.float32)
             .at[0:d, 0:d].set(w_ur2).at[d:d2, d:d2].set(w_vr2))
    wuv1 = jnp.zeros((P, P), jnp.float32).at[0:d2, 0:d].set(w_uv1)
    wuv2 = jnp.zeros((P, P), jnp.float32).at[0:d, 0:16].set(w_uv2)
    wpack = jnp.concatenate([wu1, wv1, wblk2, wuv1, wuv2], axis=0).astype(jnp.bfloat16)

    # bias / row slab (f32): row layout documented in the kernel
    bpack = jnp.zeros((8, P), jnp.float32)
    bpack = bpack.at[0, 0:d].set(b_ur1[0]).at[0, d:d2].set(b_vr1[0])
    bpack = bpack.at[1, 0:d].set(b_ur2[0]).at[1, d:d2].set(b_vr2[0])
    bpack = bpack.at[2, 0:d].set(b_uv1[0])
    bpack = bpack.at[3, 0:16].set(b_uv2[0])
    bpack = bpack.at[4, 0:16].set(w_uv3[:, 0])     # final-layer weight row (VPU path)
    bpack = bpack.at[5, 0].set(b_uv3[0, 0])
    return wpack, bpack


if __name__ == "__main__":
    key = jax.random.PRNGKey(0)
    B, D, L = 8, 32, 4          # batch, embed_dim, history length
    n_users, n_items = 10, 12

    k_emb, k_u, k_v, k_hist, k_par = jax.random.split(key, 5)
    ke = jax.random.split(k_emb, 6)

    # stand-ins for the external encoder outputs (enc_u_history_1..4, enc_v_history)
    eu1 = jax.random.normal(ke[0], (B, D), jnp.float32)
    eu2 = jax.random.normal(ke[1], (B, D), jnp.float32)
    eu3 = jax.random.normal(ke[2], (B, D), jnp.float32)
    eu4 = jax.random.normal(ke[3], (B, D), jnp.float32)
    ev = jax.random.normal(ke[4], (B, D), jnp.float32)

    # item embedding table (enc_v_history.features.weight) + index glue
    v_embed = jax.random.normal(ke[5], (n_items, D), jnp.float32)
    nodes_u = jax.random.randint(k_u, (B,), 0, n_users)
    nodes_v = jax.random.randint(k_v, (B,), 0, n_items)
    h_u0 = jax.random.randint(k_hist, (n_users, L), 0, n_items)  # h_u0_lists (fixed L)

    newv = v_embed[nodes_v]              # [B, D]
    neigh = v_embed[h_u0[nodes_u]]       # [B, L, D]

    params = init_params(k_par, D)

    # TODO(synk): flag==1 / out==1 bookkeeping (close_items, `time` list) is pure
    # Python list logic over ragged history lists and is not kernelised.
    ratings = mtge_forward(eu1, eu2, eu3, eu4, ev, newv, neigh, params)
    jax.block_until_ready(ratings)
    assert ratings.shape == (B,)
    assert bool(jnp.all(jnp.isfinite(ratings)))
    print("KERNEL_OK")
</pallas_src>

<mosaic_0001>
module attributes {stable_mosaic.version = 11 : i64} {
  func.func @kernel(%arg0: i32, %arg1: memref<8x32xf32, #tpu.memory_space<vmem>>, %arg2: memref<8x32xf32, #tpu.memory_space<vmem>>, %arg3: memref<8x32xf32, #tpu.memory_space<vmem>>, %arg4: memref<8x32xf32, #tpu.memory_space<vmem>>, %arg5: memref<8x32xf32, #tpu.memory_space<vmem>>, %arg6: memref<8x32xf32, #tpu.memory_space<vmem>>, %arg7: memref<8x128xf32, #tpu.memory_space<vmem>>, %arg8: memref<448x128xbf16, #tpu.memory_space<vmem>>, %arg9: memref<8x128xf32, #tpu.memory_space<vmem>>, %arg10: memref<8x1xf32, #tpu.memory_space<vmem>>) attributes {dimension_semantics = [#tpu.dimension_semantics<parallel>], iteration_bounds = array<i64: 1>, scalar_prefetch = 0 : i64, scratch_operands = 0 : i64, tpu.core_type = #tpu.core_type<tc>, window_params = [{transform_indices = @transform_0, window_bounds = array<i64: 8, 32>}, {transform_indices = @transform_1, window_bounds = array<i64: 8, 32>}, {transform_indices = @transform_2, window_bounds = array<i64: 8, 32>}, {transform_indices = @transform_3, window_bounds = array<i64: 8, 32>}, {transform_indices = @transform_4, window_bounds = array<i64: 8, 32>}, {transform_indices = @transform_5, window_bounds = array<i64: 8, 32>}, {transform_indices = @transform_6, window_bounds = array<i64: 8, 128>}, {pipeline_mode = #tpu.pipeline_mode<synchronous>, transform_indices = @transform_7, window_bounds = array<i64: 448, 128>}, {pipeline_mode = #tpu.pipeline_mode<synchronous>, transform_indices = @transform_8, window_bounds = array<i64: 8, 128>}, {pipeline_mode = #tpu.pipeline_mode<synchronous>, transform_indices = @transform_9, window_bounds = array<i64: 8, 1>}]} {
    %c0 = arith.constant 0 : index
    %c0_0 = arith.constant 0 : index
    %0 = vector.load %arg1[%c0, %c0_0] : memref<8x32xf32, #tpu.memory_space<vmem>>, vector<8x32xf32>
    %c0_1 = arith.constant 0 : index
    %c0_2 = arith.constant 0 : index
    %1 = vector.load %arg2[%c0_1, %c0_2] : memref<8x32xf32, #tpu.memory_space<vmem>>, vector<8x32xf32>
    %c0_3 = arith.constant 0 : index
    %c0_4 = arith.constant 0 : index
    %2 = vector.load %arg3[%c0_3, %c0_4] : memref<8x32xf32, #tpu.memory_space<vmem>>, vector<8x32xf32>
    %c0_5 = arith.constant 0 : index
    %c0_6 = arith.constant 0 : index
    %3 = vector.load %arg4[%c0_5, %c0_6] : memref<8x32xf32, #tpu.memory_space<vmem>>, vector<8x32xf32>
    %cst = arith.constant 0.0320586041 : f32
    %4 = vector.broadcast %cst : f32 to vector<8x32xf32>
    %5 = arith.mulf %0, %4 : vector<8x32xf32>
    %cst_7 = arith.constant 0.0871443152 : f32
    %6 = vector.broadcast %cst_7 : f32 to vector<8x32xf32>
    %7 = arith.mulf %1, %6 : vector<8x32xf32>
    %8 = arith.addf %5, %7 : vector<8x32xf32>
    %cst_8 = arith.constant 0.236882821 : f32
    %9 = vector.broadcast %cst_8 : f32 to vector<8x32xf32>
    %10 = arith.mulf %2, %9 : vector<8x32xf32>
    %11 = arith.addf %8, %10 : vector<8x32xf32>
    %cst_9 = arith.constant 0.643914282 : f32
    %12 = vector.broadcast %cst_9 : f32 to vector<8x32xf32>
    %13 = arith.mulf %3, %12 : vector<8x32xf32>
    %14 = arith.addf %11, %13 : vector<8x32xf32>
    %c0_10 = arith.constant 0 : index
    %c0_11 = arith.constant 0 : index
    %15 = vector.load %arg5[%c0_10, %c0_11] : memref<8x32xf32, #tpu.memory_space<vmem>>, vector<8x32xf32>
    %c0_12 = arith.constant 0 : index
    %c0_13 = arith.constant 0 : index
    %16 = vector.load %arg8[%c0_12, %c0_13] : memref<448x128xbf16, #tpu.memory_space<vmem>>, vector<32x128xbf16>
    %c32 = arith.constant 32 : index
    %c0_14 = arith.constant 0 : index
    %17 = vector.load %arg8[%c32, %c0_14] : memref<448x128xbf16, #tpu.memory_space<vmem>>, vector<32x128xbf16>
    %c64 = arith.constant 64 : index
    %c0_15 = arith.constant 0 : index
    %18 = vector.load %arg8[%c64, %c0_15] : memref<448x128xbf16, #tpu.memory_space<vmem>>, vector<128x128xbf16>
    %c192 = arith.constant 192 : index
    %c0_16 = arith.constant 0 : index
    %19 = vector.load %arg8[%c192, %c0_16] : memref<448x128xbf16, #tpu.memory_space<vmem>>, vector<128x128xbf16>
    %c320 = arith.constant 320 : index
    %c0_17 = arith.constant 0 : index
    %20 = vector.load %arg8[%c320, %c0_17] : memref<448x128xbf16, #tpu.memory_space<vmem>>, vector<128x128xbf16>
    %21 = arith.truncf %14 : vector<8x32xf32> to vector<8x32xbf16>
    %cst_18 = arith.constant dense<0.000000e+00> : vector<8x128xf32>
    %22 = tpu.matmul %21, %16, %cst_18 {dimension_numbers = #tpu.dot_dimension_numbers<[1], [0], [0], [1], [0, 0, 1, 1], [], []>} : vector<8x32xbf16>, vector<32x128xbf16>, vector<8x128xf32> -> vector<8x128xf32>
    %23 = arith.truncf %15 : vector<8x32xf32> to vector<8x32xbf16>
    %cst_19 = arith.constant dense<0.000000e+00> : vector<8x128xf32>
    %24 = tpu.matmul %23, %17, %cst_19 {dimension_numbers = #tpu.dot_dimension_numbers<[1], [0], [0], [1], [0, 0, 1, 1], [], []>} : vector<8x32xbf16>, vector<32x128xbf16>, vector<8x128xf32> -> vector<8x128xf32>
    %25 = arith.addf %22, %24 : vector<8x128xf32>
    %c0_20 = arith.constant 0 : index
    %c0_21 = arith.constant 0 : index
    %26 = vector.load %arg9[%c0_20, %c0_21] : memref<8x128xf32, #tpu.memory_space<vmem>>, vector<1x128xf32>
    %27 = vector.broadcast %26 : vector<1x128xf32> to vector<8x128xf32>
    %28 = arith.addf %25, %27 : vector<8x128xf32>
    %cst_22 = arith.constant 0.000000e+00 : f32
    %29 = vector.broadcast %cst_22 : f32 to vector<8x128xf32>
    %30 = arith.maximumf %28, %29 : vector<8x128xf32>
    %31 = arith.truncf %30 : vector<8x128xf32> to vector<8x128xbf16>
    %cst_23 = arith.constant dense<0.000000e+00> : vector<8x128xf32>
    %32 = tpu.matmul %31, %18, %cst_23 {dimension_numbers = #tpu.dot_dimension_numbers<[1], [0], [0], [1], [0, 0, 1, 1], [], []>} : vector<8x128xbf16>, vector<128x128xbf16>, vector<8x128xf32> -> vector<8x128xf32>
    %c1 = arith.constant 1 : index
    %c0_24 = arith.constant 0 : index
    %33 = vector.load %arg9[%c1, %c0_24] : memref<8x128xf32, #tpu.memory_space<vmem>>, vector<1x128xf32>
    %34 = vector.broadcast %33 : vector<1x128xf32> to vector<8x128xf32>
    %35 = arith.addf %32, %34 : vector<8x128xf32>
    %36 = arith.truncf %35 : vector<8x128xf32> to vector<8x128xbf16>
    %cst_25 = arith.constant dense<0.000000e+00> : vector<8x128xf32>
    %37 = tpu.matmul %36, %19, %cst_25 {dimension_numbers = #tpu.dot_dimension_numbers<[1], [0], [0], [1], [0, 0, 1, 1], [], []>} : vector<8x128xbf16>, vector<128x128xbf16>, vector<8x128xf32> -> vector<8x128xf32>
    %c2 = arith.constant 2 : index
    %c0_26 = arith.constant 0 : index
    %38 = vector.load %arg9[%c2, %c0_26] : memref<8x128xf32, #tpu.memory_space<vmem>>, vector<1x128xf32>
    %39 = vector.broadcast %38 : vector<1x128xf32> to vector<8x128xf32>
    %40 = arith.addf %37, %39 : vector<8x128xf32>
    %cst_27 = arith.constant 0.000000e+00 : f32
    %41 = vector.broadcast %cst_27 : f32 to vector<8x128xf32>
    %42 = arith.maximumf %40, %41 : vector<8x128xf32>
    %43 = arith.truncf %42 : vector<8x128xf32> to vector<8x128xbf16>
    %cst_28 = arith.constant dense<0.000000e+00> : vector<8x128xf32>
    %44 = tpu.matmul %43, %20, %cst_28 {dimension_numbers = #tpu.dot_dimension_numbers<[1], [0], [0], [1], [0, 0, 1, 1], [], []>} : vector<8x128xbf16>, vector<128x128xbf16>, vector<8x128xf32> -> vector<8x128xf32>
    %c3 = arith.constant 3 : index
    %c0_29 = arith.constant 0 : index
    %45 = vector.load %arg9[%c3, %c0_29] : memref<8x128xf32, #tpu.memory_space<vmem>>, vector<1x128xf32>
    %46 = vector.broadcast %45 : vector<1x128xf32> to vector<8x128xf32>
    %47 = arith.addf %44, %46 : vector<8x128xf32>
    %cst_30 = arith.constant 0.000000e+00 : f32
    %48 = vector.broadcast %cst_30 : f32 to vector<8x128xf32>
    %49 = arith.maximumf %47, %48 : vector<8x128xf32>
    %c4 = arith.constant 4 : index
    %c0_31 = arith.constant 0 : index
    %50 = vector.load %arg9[%c4, %c0_31] : memref<8x128xf32, #tpu.memory_space<vmem>>, vector<1x128xf32>
    %51 = vector.broadcast %50 : vector<1x128xf32> to vector<8x128xf32>
    %52 = arith.mulf %49, %51 : vector<8x128xf32>
    %cst_32 = arith.constant dense<0.000000e+00> : vector<8xf32>
    %53 = vector.multi_reduction <add>, %52, %cst_32 [1] : vector<8x128xf32> to vector<8xf32>
    %54 = vector.shape_cast %53 : vector<8xf32> to vector<8x1xf32>
    %c5 = arith.constant 5 : index
    %c0_33 = arith.constant 0 : index
    %55 = vector.load %arg9[%c5, %c0_33] : memref<8x128xf32, #tpu.memory_space<vmem>>, vector<1x1xf32>
    %56 = vector.broadcast %55 : vector<1x1xf32> to vector<8x1xf32>
    %57 = arith.addf %54, %56 : vector<8x1xf32>
    %58 = arith.subf %0, %1 : vector<8x32xf32>
    %59 = arith.mulf %58, %58 : vector<8x32xf32>
    %cst_34 = arith.constant dense<0.000000e+00> : vector<8xf32>
    %60 = vector.multi_reduction <add>, %59, %cst_34 [1] : vector<8x32xf32> to vector<8xf32>
    %61 = vector.shape_cast %60 : vector<8xf32> to vector<8x1xf32>
    %62 = math.sqrt %61 : vector<8x1xf32>
    %63 = arith.subf %1, %2 : vector<8x32xf32>
    %64 = arith.mulf %63, %63 : vector<8x32xf32>
    %cst_35 = arith.constant dense<0.000000e+00> : vector<8xf32>
    %65 = vector.multi_reduction <add>, %64, %cst_35 [1] : vector<8x32xf32> to vector<8xf32>
    %66 = vector.shape_cast %65 : vector<8xf32> to vector<8x1xf32>
    %67 = math.sqrt %66 : vector<8x1xf32>
    %68 = arith.addf %62, %67 : vector<8x1xf32>
    %69 = arith.subf %2, %3 : vector<8x32xf32>
    %70 = arith.mulf %69, %69 : vector<8x32xf32>
    %cst_36 = arith.constant dense<0.000000e+00> : vector<8xf32>
    %71 = vector.multi_reduction <add>, %70, %cst_36 [1] : vector<8x32xf32> to vector<8xf32>
    %72 = vector.shape_cast %71 : vector<8xf32> to vector<8x1xf32>
    %73 = math.sqrt %72 : vector<8x1xf32>
    %74 = arith.addf %68, %73 : vector<8x1xf32>
    %cst_37 = arith.constant 0.333333343 : f32
    %75 = vector.broadcast %cst_37 : f32 to vector<8x1xf32>
    %76 = arith.mulf %74, %75 : vector<8x1xf32>
    %c0_38 = arith.constant 0 : index
    %c0_39 = arith.constant 0 : index
    %77 = vector.load %arg6[%c0_38, %c0_39] : memref<8x32xf32, #tpu.memory_space<vmem>>, vector<8x32xf32>
    %c0_40 = arith.constant 0 : index
    %c0_41 = arith.constant 0 : index
    %78 = vector.load %arg7[%c0_40, %c0_41] : memref<8x128xf32, #tpu.memory_space<vmem>>, vector<8x128xf32>
    %79 = vector.extract_strided_slice %78 {offsets = [0, 0], sizes = [8, 32], strides = [1, 1]} : vector<8x128xf32> to vector<8x32xf32>
    %80 = arith.subf %79, %77 : vector<8x32xf32>
    %81 = arith.mulf %80, %80 : vector<8x32xf32>
    %cst_42 = arith.constant dense<0.000000e+00> : vector<8xf32>
    %82 = vector.multi_reduction <add>, %81, %cst_42 [1] : vector<8x32xf32> to vector<8xf32>
    %83 = vector.shape_cast %82 : vector<8xf32> to vector<8x1xf32>
    %84 = vector.extract_strided_slice %78 {offsets = [0, 32], sizes = [8, 32], strides = [1, 1]} : vector<8x128xf32> to vector<8x32xf32>
    %85 = arith.subf %84, %77 : vector<8x32xf32>
    %86 = arith.mulf %85, %85 : vector<8x32xf32>
    %cst_43 = arith.constant dense<0.000000e+00> : vector<8xf32>
    %87 = vector.multi_reduction <add>, %86, %cst_43 [1] : vector<8x32xf32> to vector<8xf32>
    %88 = vector.shape_cast %87 : vector<8xf32> to vector<8x1xf32>
    %89 = arith.minimumf %83, %88 : vector<8x1xf32>
    %90 = vector.extract_strided_slice %78 {offsets = [0, 64], sizes = [8, 32], strides = [1, 1]} : vector<8x128xf32> to vector<8x32xf32>
    %91 = arith.subf %90, %77 : vector<8x32xf32>
    %92 = arith.mulf %91, %91 : vector<8x32xf32>
    %cst_44 = arith.constant dense<0.000000e+00> : vector<8xf32>
    %93 = vector.multi_reduction <add>, %92, %cst_44 [1] : vector<8x32xf32> to vector<8xf32>
    %94 = vector.shape_cast %93 : vector<8xf32> to vector<8x1xf32>
    %95 = arith.minimumf %89, %94 : vector<8x1xf32>
    %96 = vector.extract_strided_slice %78 {offsets = [0, 96], sizes = [8, 32], strides = [1, 1]} : vector<8x128xf32> to vector<8x32xf32>
    %97 = arith.subf %96, %77 : vector<8x32xf32>
    %98 = arith.mulf %97, %97 : vector<8x32xf32>
    %cst_45 = arith.constant dense<0.000000e+00> : vector<8xf32>
    %99 = vector.multi_reduction <add>, %98, %cst_45 [1] : vector<8x32xf32> to vector<8xf32>
    %100 = vector.shape_cast %99 : vector<8xf32> to vector<8x1xf32>
    %101 = arith.minimumf %95, %100 : vector<8x1xf32>
    %cst_46 = arith.constant 9.998000e+07 : f32
    %102 = vector.broadcast %cst_46 : f32 to vector<8x1xf32>
    %103 = arith.minimumf %101, %102 : vector<8x1xf32>
    %104 = math.sqrt %103 : vector<8x1xf32>
    %105 = vector.shape_cast %104 : vector<8x1xf32> to vector<1x8x1xf32>
    %cst_47 = arith.constant dense<0x7F800000> : vector<1xf32>
    %106 = vector.multi_reduction <minimumf>, %105, %cst_47 [1, 2] : vector<1x8x1xf32> to vector<1xf32>
    %107 = vector.shape_cast %106 : vector<1xf32> to vector<1x1x1xf32>
    %108 = vector.extract %107[0, 0, 0] : f32 from vector<1x1x1xf32>
    %109 = vector.shape_cast %104 : vector<8x1xf32> to vector<1x8x1xf32>
    %cst_48 = arith.constant dense<0xFF800000> : vector<1xf32>
    %110 = vector.multi_reduction <maximumf>, %109, %cst_48 [1, 2] : vector<1x8x1xf32> to vector<1xf32>
    %111 = vector.shape_cast %110 : vector<1xf32> to vector<1x1x1xf32>
    %112 = vector.extract %111[0, 0, 0] : f32 from vector<1x1x1xf32>
    %113 = arith.subf %112, %108 : f32
    %cst_49 = arith.constant 0.000000e+00 : f32
    %114 = arith.cmpf oeq, %113, %cst_49 : f32
    %cst_50 = arith.constant 1.000000e+00 : f32
    %115 = arith.select %114, %cst_50, %113 : f32
    %116 = vector.broadcast %108 : f32 to vector<8x1xf32>
    %117 = arith.subf %104, %116 : vector<8x1xf32>
    %118 = vector.broadcast %115 : f32 to vector<8x1xf32>
    %119 = arith.divf %117, %118 : vector<8x1xf32>
    %cst_51 = arith.constant 6.000000e+00 : f32
    %120 = vector.broadcast %cst_51 : f32 to vector<8x1xf32>
    %121 = arith.mulf %120, %119 : vector<8x1xf32>
    %cst_52 = arith.constant -6.000000e+00 : f32
    %122 = vector.broadcast %cst_52 : f32 to vector<8x1xf32>
    %123 = arith.mulf %122, %119 : vector<8x1xf32>
    %124 = math.exp %123 : vector<8x1xf32>
    %125 = arith.mulf %121, %124 : vector<8x1xf32>
    %126 = vector.shape_cast %76 : vector<8x1xf32> to vector<1x8x1xf32>
    %cst_53 = arith.constant dense<0x7F800000> : vector<1xf32>
    %127 = vector.multi_reduction <minimumf>, %126, %cst_53 [1, 2] : vector<1x8x1xf32> to vector<1xf32>
    %128 = vector.shape_cast %127 : vector<1xf32> to vector<1x1x1xf32>
    %129 = vector.extract %128[0, 0, 0] : f32 from vector<1x1x1xf32>
    %130 = vector.shape_cast %76 : vector<8x1xf32> to vector<1x8x1xf32>
    %cst_54 = arith.constant dense<0xFF800000> : vector<1xf32>
    %131 = vector.multi_reduction <maximumf>, %130, %cst_54 [1, 2] : vector<1x8x1xf32> to vector<1xf32>
    %132 = vector.shape_cast %131 : vector<1xf32> to vector<1x1x1xf32>
    %133 = vector.extract %132[0, 0, 0] : f32 from vector<1x1x1xf32>
    %134 = arith.subf %133, %129 : f32
    %cst_55 = arith.constant 0.000000e+00 : f32
    %135 = arith.cmpf oeq, %134, %cst_55 : f32
    %cst_56 = arith.constant 1.000000e+00 : f32
    %136 = arith.select %135, %cst_56, %134 : f32
    %137 = vector.broadcast %129 : f32 to vector<8x1xf32>
    %138 = arith.subf %76, %137 : vector<8x1xf32>
    %139 = vector.broadcast %136 : f32 to vector<8x1xf32>
    %140 = arith.divf %138, %139 : vector<8x1xf32>
    %141 = arith.mulf %125, %140 : vector<8x1xf32>
    %142 = arith.addf %57, %141 : vector<8x1xf32>
    %c0_57 = arith.constant 0 : index
    %c0_58 = arith.constant 0 : index
    %143 = vector.load %arg10[%c0_57, %c0_58] : memref<8x1xf32, #tpu.memory_space<vmem>>, vector<8x1xf32>
    tpu.vector_store %arg10[%c0_57, %c0_58], %142 {strides = array<i32>} : memref<8x1xf32, #tpu.memory_space<vmem>>, vector<8x1xf32>,
    return
  }
  func.func @transform_0(%arg0: i32) -> (i32, i32) {
    %c0_i32 = arith.constant 0 : i32
    %c0_i32_0 = arith.constant 0 : i32
    return %arg0, %c0_i32 : i32, i32
  }
  func.func @transform_1(%arg0: i32) -> (i32, i32) {
    %c0_i32 = arith.constant 0 : i32
    %c0_i32_0 = arith.constant 0 : i32
    return %arg0, %c0_i32 : i32, i32
  }
  func.func @transform_2(%arg0: i32) -> (i32, i32) {
    %c0_i32 = arith.constant 0 : i32
    %c0_i32_0 = arith.constant 0 : i32
    return %arg0, %c0_i32 : i32, i32
  }
  func.func @transform_3(%arg0: i32) -> (i32, i32) {
    %c0_i32 = arith.constant 0 : i32
    %c0_i32_0 = arith.constant 0 : i32
    return %arg0, %c0_i32 : i32, i32
  }
  func.func @transform_4(%arg0: i32) -> (i32, i32) {
    %c0_i32 = arith.constant 0 : i32
    %c0_i32_0 = arith.constant 0 : i32
    return %arg0, %c0_i32 : i32, i32
  }
  func.func @transform_5(%arg0: i32) -> (i32, i32) {
    %c0_i32 = arith.constant 0 : i32
    %c0_i32_0 = arith.constant 0 : i32
    return %arg0, %c0_i32 : i32, i32
  }
  func.func @transform_6(%arg0: i32) -> (i32, i32) {
    %c0_i32 = arith.constant 0 : i32
    %c0_i32_0 = arith.constant 0 : i32
    return %arg0, %c0_i32 : i32, i32
  }
  func.func @transform_7(%arg0: i32) -> (i32, i32) {
    %c0_i32 = arith.constant 0 : i32
    %c0_i32_0 = arith.constant 0 : i32
    %c0_i32_1 = arith.constant 0 : i32
    return %c0_i32, %c0_i32_0 : i32, i32
  }
  func.func @transform_8(%arg0: i32) -> (i32, i32) {
    %c0_i32 = arith.constant 0 : i32
    %c0_i32_0 = arith.constant 0 : i32
    %c0_i32_1 = arith.constant 0 : i32
    return %c0_i32, %c0_i32_0 : i32, i32
  }
  func.func @transform_9(%arg0: i32) -> (i32, i32) {
    %c0_i32 = arith.constant 0 : i32
    %c0_i32_0 = arith.constant 0 : i32
    %c0_i32_1 = arith.constant 0 : i32
    return %c0_i32, %c0_i32_0 : i32, i32
  }
}

</mosaic_0001>

<llo_original>
// kernel: tpu_custom_call.1
$region0: #{tpu_custom_call.1}
  #allocation0 [shape = 'u32[]', space=smem, size = 0x4, offset = 0x4, fixed_abs, tag = 'smem constant byte address 0x4 - core index']
  #allocation1 [shape = 'u32[144,128]{1,0:T(1,128)}', space=vmem, size = 0x12000, scoped, tag = 'internal scratch']
  %s0 = inlined_call_operand.hbm [shape: f32[8,32], index: 0, kind: input, shape index: {}]
  %s1 = inlined_call_operand.hbm [shape: f32[8,32], index: 1, kind: input, shape index: {}]
  %s2 = inlined_call_operand.hbm [shape: f32[8,32], index: 2, kind: input, shape index: {}]
  %s3 = inlined_call_operand.hbm [shape: f32[8,32], index: 3, kind: input, shape index: {}]
  %s4 = inlined_call_operand.hbm [shape: f32[8,32], index: 4, kind: input, shape index: {}]
  %s5 = inlined_call_operand.vmem [shape: f32[8,32], index: 5, kind: input, shape index: {}]
  %s6 = inlined_call_operand.hbm [shape: f32[8,128], index: 6, kind: input, shape index: {}]
  %s7 = inlined_call_operand.hbm [shape: bf16[448,128], index: 7, kind: input, shape index: {}]
  %s8 = inlined_call_operand.hbm [shape: f32[8,128], index: 8, kind: input, shape index: {}]
  %s9 = inlined_call_operand.vmem [shape: f32[8,1], index: 9, kind: output, shape index: {}]
  %s10 = sld [smem:[#allocation0]]
  $region78: #{tpu_custom_call.1} parent=0
    _
  %s12 = ssub.s32 1, %s10
  %s13 = scalar_select 0, %s12, %s10
  $region1: #{tpu_custom_call.1} parent=0
    #allocation2 [shape = 'u8[4096]{0}', space=vmem, size = 0x1000, scoped, tag = 'input window, operand 0, single buffered']
    #allocation3 [shape = 's32[1]{0}', space=sflag, size = 0x4, scoped, tag = 'scoped memory for tpu_custom_call.1']
    #allocation4 [shape = 'u8[4096]{0}', space=vmem, size = 0x1000, scoped, tag = 'input window, operand 1, single buffered']
    #allocation5 [shape = 's32[1]{0}', space=sflag, size = 0x4, scoped, tag = 'scoped memory for tpu_custom_call.1']
    #allocation6 [shape = 'u8[4096]{0}', space=vmem, size = 0x1000, scoped, tag = 'input window, operand 2, single buffered']
    #allocation7 [shape = 'u8[4096]{0}', space=vmem, size = 0x1000, scoped, tag = 'input window, operand 3, single buffered']
    #allocation8 [shape = 's32[1]{0}', space=sflag, size = 0x4, scoped, tag = 'scoped memory for tpu_custom_call.1']
    #allocation9 [shape = 'u8[4096]{0}', space=vmem, size = 0x1000, scoped, tag = 'input window, operand 4, single buffered']
    #allocation10 [shape = 'u8[4096]{0}', space=vmem, size = 0x1000, scoped, tag = 'input window, operand 6, single buffered']
    #allocation11 [shape = 's32[1]{0}', space=sflag, size = 0x4, scoped, tag = 'scoped memory for tpu_custom_call.1']
    #allocation12 [shape = 'u8[114688]{0}', space=vmem, size = 0x1c000, scoped, tag = 'input window, operand 7, single buffered']
    #allocation13 [shape = 'u8[4096]{0}', space=vmem, size = 0x1000, scoped, tag = 'input window, operand 8, single buffered']
    #allocation14 [shape = 's32[1]{0}', space=sflag, size = 0x4, scoped, tag = 'scoped memory for tpu_custom_call.1']
    %14 = vsyncpa [#allocation3], 0
    %15 = vsyncpa [#allocation5], 0
    %16 = vsyncpa [#allocation8], 0
    %17 = vsyncpa [#allocation11], 0
    %18 = vsyncpa [#allocation14], 0
    // Predicated region
    $region2: #{tpu_custom_call.1} parent=1 // pred_check
      _
    $region3: #{tpu_custom_call.1} parent=1 // pred_check_branch
      %20 = sbr.rel (0) target = $region5
    $region4: #{tpu_custom_call.1} parent=1 // pred_region
      %s22 = ssub.s32 128, 128
      %23 = vsyncadd [#allocation3], %s22
      %s25 = sshll.u32 [#allocation2], 4
      %s26 = int_to_ptr.vmem [resolvable:$true] %s25
      %28 = dma.hbm_to_vmem [thread:$0]  %s0, 128, %s26, [#allocation3]
    $region5: #{tpu_custom_call.1} parent=1 // pred_fallthru
      _
    // Predicated region
    $region6: #{tpu_custom_call.1} parent=1 // pred_check
      _
    $region7: #{tpu_custom_call.1} parent=1 // pred_check_branch
      %30 = sbr.rel (0) target = $region9
    $region8: #{tpu_custom_call.1} parent=1 // pred_region
      %s32 = ssub.s32 128, 128
      %33 = vsyncadd [#allocation5], %s32
      %s35 = sshll.u32 [#allocation4], 4
      %s36 = int_to_ptr.vmem [resolvable:$true] %s35
      %38 = dma.hbm_to_vmem [thread:$0]  %s1, 128, %s36, [#allocation5]
    $region9: #{tpu_custom_call.1} parent=1 // pred_fallthru
      _
    // Predicated region
    $region10: #{tpu_custom_call.1} parent=1 // pred_check
      _
    $region11: #{tpu_custom_call.1} parent=1 // pred_check_branch
      %40 = sbr.rel (0) target = $region13
    $region12: #{tpu_custom_call.1} parent=1 // pred_region
      %s42 = ssub.s32 128, 128
      %43 = vsyncadd [#allocation5], %s42
      %s45 = sshll.u32 [#allocation6], 4
      %s46 = int_to_ptr.vmem [resolvable:$true] %s45
      %48 = dma.hbm_to_vmem [thread:$0]  %s2, 128, %s46, [#allocation5]
    $region13: #{tpu_custom_call.1} parent=1 // pred_fallthru
      _
    // Predicated region
    $region14: #{tpu_custom_call.1} parent=1 // pred_check
      _
    $region15: #{tpu_custom_call.1} parent=1 // pred_check_branch
      %50 = sbr.rel (0) target = $region17
    $region16: #{tpu_custom_call.1} parent=1 // pred_region
      %s52 = ssub.s32 128, 128
      %53 = vsyncadd [#allocation8], %s52
      %s55 = sshll.u32 [#allocation7], 4
      %s56 = int_to_ptr.vmem [resolvable:$true] %s55
      %58 = dma.hbm_to_vmem [thread:$0]  %s3, 128, %s56, [#allocation8]
    $region17: #{tpu_custom_call.1} parent=1 // pred_fallthru
      _
    // Predicated region
    $region18: #{tpu_custom_call.1} parent=1 // pred_check
      _
    $region19: #{tpu_custom_call.1} parent=1 // pred_check_branch
      %60 = sbr.rel (0) target = $region21
    $region20: #{tpu_custom_call.1} parent=1 // pred_region
      %s62 = ssub.s32 128, 128
      %63 = vsyncadd [#allocation8], %s62
      %s65 = sshll.u32 [#allocation9], 4
      %s66 = int_to_ptr.vmem [resolvable:$true] %s65
      %68 = dma.hbm_to_vmem [thread:$0]  %s4, 128, %s66, [#allocation8]
    $region21: #{tpu_custom_call.1} parent=1 // pred_fallthru
      _
    // Predicated region
    $region22: #{tpu_custom_call.1} parent=1 // pred_check
      _
    $region23: #{tpu_custom_call.1} parent=1 // pred_check_branch
      %70 = sbr.rel (0) target = $region25
    $region24: #{tpu_custom_call.1} parent=1 // pred_region
      _
    $region25: #{tpu_custom_call.1} parent=1 // pred_fallthru
      _
    // Predicated region
    $region26: #{tpu_custom_call.1} parent=1 // pred_check
      _
    $region27: #{tpu_custom_call.1} parent=1 // pred_check_branch
      %72 = sbr.rel (0) target = $region29
    $region28: #{tpu_custom_call.1} parent=1 // pred_region
      %s74 = ssub.s32 128, 128
      %75 = vsyncadd [#allocation11], %s74
      %s77 = sshll.u32 [#allocation10], 4
      %s78 = int_to_ptr.vmem [resolvable:$true] %s77
      %80 = dma.hbm_to_vmem [thread:$0]  %s6, 128, %s78, [#allocation11]
    $region29: #{tpu_custom_call.1} parent=1 // pred_fallthru
      _
    // Predicated region
    $region30: #{tpu_custom_call.1} parent=1 // pred_check
      _
    $region31: #{tpu_custom_call.1} parent=1 // pred_check_branch
      %82 = sbr.rel (0) target = $region33
    $region32: #{tpu_custom_call.1} parent=1 // pred_region
      %s84 = ssub.s32 3584, 3584
      %85 = vsyncadd [#allocation11], %s84
      %s86 = sshll.u32 [#allocation12], 4
      %s87 = int_to_ptr.vmem [resolvable:$true] %s86
      %92 = dma.hbm_to_vmem [thread:$0]  %s7, 3584, %s87, [#allocation11], 64, 64, 4
    $region33: #{tpu_custom_call.1} parent=1 // pred_fallthru
      _
    // Predicated region
    $region34: #{tpu_custom_call.1} parent=1 // pred_check
      _
    $region35: #{tpu_custom_call.1} parent=1 // pred_check_branch
      %94 = sbr.rel (0) target = $region37
    $region36: #{tpu_custom_call.1} parent=1 // pred_region
      %s96 = ssub.s32 128, 128
      %97 = vsyncadd [#allocation14], %s96
      %s99 = sshll.u32 [#allocation13], 4
      %s100 = int_to_ptr.vmem [resolvable:$true] %s99
      %102 = dma.hbm_to_vmem [thread:$0]  %s8, 128, %s100, [#allocation14]
    $region37: #{tpu_custom_call.1} parent=1 // pred_fallthru
      _
    // Predicated region
    $region38: #{tpu_custom_call.1} parent=1 // pred_check
      _
    $region39: #{tpu_custom_call.1} parent=1 // pred_check_branch
      %104 = sbr.rel (0) target = $region41
    $region40: #{tpu_custom_call.1} parent=1 // pred_region
      %105 = dma.done [#allocation3], 128
    $region41: #{tpu_custom_call.1} parent=1 // pred_fallthru
      _
    // Predicated region
    $region42: #{tpu_custom_call.1} parent=1 // pred_check
      _
    $region43: #{tpu_custom_call.1} parent=1 // pred_check_branch
      %107 = sbr.rel (0) target = $region45
    $region44: #{tpu_custom_call.1} parent=1 // pred_region
      %108 = dma.done [#allocation5], 128
    $region45: #{tpu_custom_call.1} parent=1 // pred_fallthru
      _
    // Predicated region
    $region46: #{tpu_custom_call.1} parent=1 // pred_check
      _
    $region47: #{tpu_custom_call.1} parent=1 // pred_check_branch
      %110 = sbr.rel (0) target = $region49
    $region48: #{tpu_custom_call.1} parent=1 // pred_region
      %111 = dma.done [#allocation5], 128
    $region49: #{tpu_custom_call.1} parent=1 // pred_fallthru
      _
    // Predicated region
    $region50: #{tpu_custom_call.1} parent=1 // pred_check
      _
    $region51: #{tpu_custom_call.1} parent=1 // pred_check_branch
      %113 = sbr.rel (0) target = $region53
    $region52: #{tpu_custom_call.1} parent=1 // pred_region
      %114 = dma.done [#allocation8], 128
    $region53: #{tpu_custom_call.1} parent=1 // pred_fallthru
      _
    // Predicated region
    $region54: #{tpu_custom_call.1} parent=1 // pred_check
      _
    $region55: #{tpu_custom_call.1} parent=1 // pred_check_branch
      %116 = sbr.rel (0) target = $region57
    $region56: #{tpu_custom_call.1} parent=1 // pred_region
      %117 = dma.done [#allocation8], 128
    $region57: #{tpu_custom_call.1} parent=1 // pred_fallthru
      _
    // Predicated region
    $region58: #{tpu_custom_call.1} parent=1 // pred_check
      _
    $region59: #{tpu_custom_call.1} parent=1 // pred_check_branch
      %119 = sbr.rel (0) target = $region61
    $region60: #{tpu_custom_call.1} parent=1 // pred_region
      %120 = dma.done [#allocation11], 128
    $region61: #{tpu_custom_call.1} parent=1 // pred_fallthru
      _
    // Predicated region
    $region62: #{tpu_custom_call.1} parent=1 // pred_check
      _
    $region63: #{tpu_custom_call.1} parent=1 // pred_check_branch
      %122 = sbr.rel (0) target = $region65
    $region64: #{tpu_custom_call.1} parent=1 // pred_region
      %123 = dma.done [#allocation11], 3584
    $region65: #{tpu_custom_call.1} parent=1 // pred_fallthru
      _
    // Predicated region
    $region66: #{tpu_custom_call.1} parent=1 // pred_check
      _
    $region67: #{tpu_custom_call.1} parent=1 // pred_check_branch
      %125 = sbr.rel (0) target = $region69
    $region68: #{tpu_custom_call.1} parent=1 // pred_region
      %126 = dma.done [#allocation14], 128
    $region69: #{tpu_custom_call.1} parent=1 // pred_fallthru
      _
    %v128 = vld [vmem:[#allocation2] sm:$0xff]
    %v129 = vld [vmem:[#allocation4] sm:$0xff]
    %v130 = vld [vmem:[#allocation6] sm:$0xff]
    %v131 = vld [vmem:[#allocation7] sm:$0xff]
    %v132 = vmul.f32 %v128, 0.032058604
    %v133 = vmul.f32 %v129, 0.087144315
    %v134 = vadd.f32 %v132, %v133
    %v135 = vmul.f32 %v130, 0.23688282
    %v136 = vadd.f32 %v134, %v135
    %v137 = vmul.f32 %v131, 0.6439143
    %v138 = vadd.f32 %v136, %v137
    %v139 = vld [vmem:[#allocation9] sm:$0xff]
    %v140 = vld [vmem:[#allocation12] sm:$0xf]
    %v141 = vld [vmem:[#allocation12 + $0x4] sm:$0xf]
    %v142 = vld [vmem:[#allocation12 + $0x8] sm:$0xf]
    %v143 = vld [vmem:[#allocation12 + $0xc] sm:$0xf]
    %v144 = vld [vmem:[#allocation12 + $0x10] sm:$0xf]
    %v145 = vld [vmem:[#allocation12 + $0x14] sm:$0xf]
    %v146 = vld [vmem:[#allocation12 + $0x18] sm:$0xf]
    %v147 = vld [vmem:[#allocation12 + $0x1c] sm:$0xf]
    %v148 = vld [vmem:[#allocation12 + $0x20] sm:$0xf]
    %v149 = vld [vmem:[#allocation12 + $0x24] sm:$0xf]
    %v150 = vld [vmem:[#allocation12 + $0x28] sm:$0xf]
    %v151 = vld [vmem:[#allocation12 + $0x2c] sm:$0xf]
    %v152 = vld [vmem:[#allocation12 + $0x30] sm:$0xf]
    %v153 = vld [vmem:[#allocation12 + $0x34] sm:$0xf]
    %v154 = vld [vmem:[#allocation12 + $0x38] sm:$0xf]
    %v155 = vld [vmem:[#allocation12 + $0x3c] sm:$0xf]
    %v156 = vld [vmem:[#allocation12 + $0x40] sm:$0xf]
    %v157 = vld [vmem:[#allocation12 + $0x44] sm:$0xf]
    %v158 = vld [vmem:[#allocation12 + $0x48] sm:$0xf]
    %v159 = vld [vmem:[#allocation12 + $0x4c] sm:$0xf]
    %v160 = vld [vmem:[#allocation12 + $0x50] sm:$0xf]
    %v161 = vld [vmem:[#allocation12 + $0x54] sm:$0xf]
    %v162 = vld [vmem:[#allocation12 + $0x58] sm:$0xf]
    %v163 = vld [vmem:[#allocation12 + $0x5c] sm:$0xf]
    %v164 = vld [vmem:[#allocation12 + $0x60] sm:$0xf]
    %v165 = vld [vmem:[#allocation12 + $0x64] sm:$0xf]
    %v166 = vld [vmem:[#allocation12 + $0x68] sm:$0xf]
    %v167 = vld [vmem:[#allocation12 + $0x6c] sm:$0xf]
    %v168 = vld [vmem:[#allocation12 + $0x70] sm:$0xf]
    %v169 = vld [vmem:[#allocation12 + $0x74] sm:$0xf]
    %v170 = vld [vmem:[#allocation12 + $0x78] sm:$0xf]
    %v171 = vld [vmem:[#allocation12 + $0x7c] sm:$0xf]
    %v172 = vld [vmem:[#allocation12 + $0x80] sm:$0xf]
    %v173 = vld [vmem:[#allocation12 + $0x84] sm:$0xf]
    %v174 = vld [vmem:[#allocation12 + $0x88] sm:$0xf]
    %v175 = vld [vmem:[#allocation12 + $0x8c] sm:$0xf]
    %v176 = vld [vmem:[#allocation12 + $0x90] sm:$0xf]
    %v177 = vld [vmem:[#allocation12 + $0x94] sm:$0xf]
    %v178 = vld [vmem:[#allocation12 + $0x98] sm:$0xf]
    %v179 = vld [vmem:[#allocation12 + $0x9c] sm:$0xf]
    %v180 = vld [vmem:[#allocation12 + $0xa0] sm:$0xf]
    %v181 = vld [vmem:[#allocation12 + $0xa4] sm:$0xf]
    %v182 = vld [vmem:[#allocation12 + $0xa8] sm:$0xf]
    %v183 = vld [vmem:[#allocation12 + $0xac] sm:$0xf]
    %v184 = vld [vmem:[#allocation12 + $0xb0] sm:$0xf]
    %v185 = vld [vmem:[#allocation12 + $0xb4] sm:$0xf]
    %v186 = vld [vmem:[#allocation12 + $0xb8] sm:$0xf]
    %v187 = vld [vmem:[#allocation12 + $0xbc] sm:$0xf]
    %v188 = vld [vmem:[#allocation12 + $0xc0] sm:$0xf]
    %v189 = vld [vmem:[#allocation12 + $0xc4] sm:$0xf]
    %v190 = vld [vmem:[#allocation12 + $0xc8] sm:$0xf]
    %v191 = vld [vmem:[#allocation12 + $0xcc] sm:$0xf]
    %v192 = vld [vmem:[#allocation12 + $0xd0] sm:$0xf]
    %v193 = vld [vmem:[#allocation12 + $0xd4] sm:$0xf]
    %v194 = vld [vmem:[#allocation12 + $0xd8] sm:$0xf]
    %v195 = vld [vmem:[#allocation12 + $0xdc] sm:$0xf]
    %v196 = vpack.c.bf16 %v138, %v138
    %v197 = vpack.c.bf16 %v139, %v139
    %v202 = vunpack.c.l.b16 %v144
    %v203 = vunpack.c.l.b16 %v145
    %v204 = vunpack.c.l.b16 %v146
    %v205 = vunpack.c.l.b16 %v147
    %v206 = vpack.c.b16 %v203, %v202
    %v207 = vpack.c.b16 %v205, %v204
    %vm210 = vcmask 261120
    %v212 = vsel %vm210, %v197, 0
    %214 = vmatprep.subr.bf16.mxu0 0
    %215 = vmatpush1.bf16.msra.mxu0 0
    %216 = vmatprep.subr.bf16.mxu0 0
    %217 = vmatpush1.bf16.msra.mxu0 0
    %218 = vmatprep.subr.bf16.mxu0 0
    %219 = vmatpush1.bf16.msra.mxu0 0
    %220 = vmatprep.subr.bf16.mxu0 0
    %221 = vmatpush1.bf16.msra.mxu0 0
    %222 = vmatprep.subr.bf16.mxu0 0
    %223 = vmatpush1.bf16.msra.mxu0 0
    %224 = vmatprep.subr.bf16.mxu0 0
    %225 = vmatpush1.bf16.msra.mxu0 0
    %226 = vmatprep.subr.bf16.mxu0 0
    %227 = vmatpush1.bf16.msra.mxu0 %v207
    %228 = vmatprep.subr.bf16.mxu0 0
    %229 = vmatpush1.bf16.msra.mxu0 %v206
    %230 = vmatprep.subr.bf16.mxu0 0
    %231 = vmatpush2.bf16.msra.mxu0 0
    %232 = vmatprep.subr.bf16.mxu0 0
    %233 = vmatpush2.bf16.msra.mxu0 0
    %234 = vmatprep.subr.bf16.mxu0 0
    %235 = vmatpush2.bf16.msra.mxu0 0
    %236 = vmatprep.subr.bf16.mxu0 0
    %237 = vmatpush2.bf16.msra.mxu0 0
    %238 = vmatprep.subr.bf16.mxu0 0
    %239 = vmatpush2.bf16.msra.mxu0 0
    %240 = vmatprep.subr.bf16.mxu0 0
    %241 = vmatpush2.bf16.msra.mxu0 0
    %242 = vmatprep.subr.bf16.mxu0 0
    %243 = vmatpush2.bf16.msra.mxu0 0
    %244 = vmatprep.subr.bf16.mxu0 0
    %245 = vmatpush2.bf16.msra.mxu0 0
    %246 = vmatprep.mubr.bf16.mxu0 0
    %247 = vmatmul.mubr.bf16.gmra.mxu0 %v212
    %v248 = vpop.f32.mrf.mxu0
    %v249 = vadd.f32 0.0, %v248
    %v250 = vpop.f32.mrf.mxu0
    %v251 = vpop.f32.mrf.mxu0
    %v252 = vpop.f32.mrf.mxu0
    %253 = vdwg.mxu0
    %v258 = vunpack.c.l.b16 %v140
    %v259 = vunpack.c.l.b16 %v141
    %v260 = vunpack.c.l.b16 %v142
    %v261 = vunpack.c.l.b16 %v143
    %v262 = vpack.c.b16 %v259, %v258
    %v263 = vpack.c.b16 %v261, %v260
    %v267 = vsel %vm210, %v196, 0
    %269 = vmatprep.subr.bf16.mxu0 0
    %270 = vmatpush1.bf16.msra.mxu0 0
    %271 = vmatprep.subr.bf16.mxu0 0
    %272 = vmatpush1.bf16.msra.mxu0 0
    %273 = vmatprep.subr.bf16.mxu0 0
    %274 = vmatpush1.bf16.msra.mxu0 0
    %275 = vmatprep.subr.bf16.mxu0 0
    %276 = vmatpush1.bf16.msra.mxu0 0
    %277 = vmatprep.subr.bf16.mxu0 0
    %278 = vmatpush1.bf16.msra.mxu0 0
    %279 = vmatprep.subr.bf16.mxu0 0
    %280 = vmatpush1.bf16.msra.mxu0 0
    %281 = vmatprep.subr.bf16.mxu0 0
    %282 = vmatpush1.bf16.msra.mxu0 %v263
    %283 = vmatprep.subr.bf16.mxu0 0
    %284 = vmatpush1.bf16.msra.mxu0 %v262
    %285 = vmatprep.subr.bf16.mxu0 0
    %286 = vmatpush2.bf16.msra.mxu0 0
    %287 = vmatprep.subr.bf16.mxu0 0
    %288 = vmatpush2.bf16.msra.mxu0 0
    %289 = vmatprep.subr.bf16.mxu0 0
    %290 = vmatpush2.bf16.msra.mxu0 0
    %291 = vmatprep.subr.bf16.mxu0 0
    %292 = vmatpush2.bf16.msra.mxu0 0
    %293 = vmatprep.subr.bf16.mxu0 0
    %294 = vmatpush2.bf16.msra.mxu0 0
    %295 = vmatprep.subr.bf16.mxu0 0
    %296 = vmatpush2.bf16.msra.mxu0 0
    %297 = vmatprep.subr.bf16.mxu0 0
    %298 = vmatpush2.bf16.msra.mxu0 0
    %299 = vmatprep.subr.bf16.mxu0 0
    %300 = vmatpush2.bf16.msra.mxu0 0
    %301 = vmatprep.mubr.bf16.mxu0 0
    %302 = vmatmul.mubr.bf16.gmra.mxu0 %v267
    %v303 = vpop.f32.mrf.mxu0
    %v304 = vadd.f32 %v249, %v303
    %v305 = vpop.f32.mrf.mxu0
    %v306 = vpop.f32.mrf.mxu0
    %v307 = vpop.f32.mrf.mxu0
    %308 = vdwg.mxu0
    %v309 = vld [vmem:[#allocation13] sm:$0x1]
    %v310 = vlaneseq
    %v311 = vshrl.u32 %v310, 7
    %v312 = vsub.s32 0, %v311
    %v313 = vrot.slane %v309, %v312
    %v314 = vadd.f32 %v304, %v313
    %v315 = vmax.f32 %v314, 0.0
    %v316 = vpack.c.bf16 %v315, %v315
    %v317 = vld [vmem:[#allocation13 + $0x1] sm:$0x1]
    %v318 = vlaneseq
    %v319 = vshrl.u32 %v318, 7
    %v320 = vsub.s32 0, %v319
    %v321 = vrot.slane %v317, %v320
    %v338 = vunpack.c.l.b16 %v148
    %v339 = vunpack.c.l.b16 %v149
    %v340 = vunpack.c.l.b16 %v150
    %v341 = vunpack.c.l.b16 %v151
    %v342 = vunpack.c.l.b16 %v152
    %v343 = vunpack.c.l.b16 %v153
    %v344 = vunpack.c.l.b16 %v154
    %v345 = vunpack.c.l.b16 %v155
    %v346 = vunpack.c.l.b16 %v156
    %v347 = vunpack.c.l.b16 %v157
    %v348 = vunpack.c.l.b16 %v158
    %v349 = vunpack.c.l.b16 %v159
    %v350 = vunpack.c.l.b16 %v160
    %v351 = vunpack.c.l.b16 %v161
    %v352 = vunpack.c.l.b16 %v162
    %v353 = vunpack.c.l.b16 %v163
    %v354 = vpack.c.b16 %v339, %v338
    %v355 = vpack.c.b16 %v341, %v340
    %v356 = vpack.c.b16 %v343, %v342
    %v357 = vpack.c.b16 %v345, %v344
    %v358 = vpack.c.b16 %v347, %v346
    %v359 = vpack.c.b16 %v349, %v348
    %v360 = vpack.c.b16 %v351, %v350
    %v361 = vpack.c.b16 %v353, %v352
    %370 = vmatprep.subr.bf16.mxu0 0
    %371 = vmatpush1.bf16.msra.mxu0 %v361
    %372 = vmatprep.subr.bf16.mxu0 0
    %373 = vmatpush1.bf16.msra.mxu0 %v360
    %374 = vmatprep.subr.bf16.mxu0 0
    %375 = vmatpush1.bf16.msra.mxu0 %v359
    %376 = vmatprep.subr.bf16.mxu0 0
    %377 = vmatpush1.bf16.msra.mxu0 %v358
    %378 = vmatprep.subr.bf16.mxu0 0
    %379 = vmatpush1.bf16.msra.mxu0 %v357
    %380 = vmatprep.subr.bf16.mxu0 0
    %381 = vmatpush1.bf16.msra.mxu0 %v356
    %382 = vmatprep.subr.bf16.mxu0 0
    %383 = vmatpush1.bf16.msra.mxu0 %v355
    %384 = vmatprep.subr.bf16.mxu0 0
    %385 = vmatpush1.bf16.msra.mxu0 %v354
    %386 = vmatprep.subr.bf16.mxu0 0
    %387 = vmatpush2.bf16.msra.mxu0 0
    %388 = vmatprep.subr.bf16.mxu0 0
    %389 = vmatpush2.bf16.msra.mxu0 0
    %390 = vmatprep.subr.bf16.mxu0 0
    %391 = vmatpush2.bf16.msra.mxu0 0
    %392 = vmatprep.subr.bf16.mxu0 0
    %393 = vmatpush2.bf16.msra.mxu0 0
    %394 = vmatprep.subr.bf16.mxu0 0
    %395 = vmatpush2.bf16.msra.mxu0 0
    %396 = vmatprep.subr.bf16.mxu0 0
    %397 = vmatpush2.bf16.msra.mxu0 0
    %398 = vmatprep.subr.bf16.mxu0 0
    %399 = vmatpush2.bf16.msra.mxu0 0
    %400 = vmatprep.subr.bf16.mxu0 0
    %401 = vmatpush2.bf16.msra.mxu0 0
    %402 = vmatprep.mubr.bf16.mxu0 0
    %403 = vmatmul.mubr.bf16.gmra.mxu0 %v316
    %v404 = vpop.f32.mrf.mxu0
    %v405 = vadd.f32 %v321, %v404
    %v406 = vpop.f32.mrf.mxu0
    %v407 = vpop.f32.mrf.mxu0
    %v408 = vpop.f32.mrf.mxu0
    %409 = vdwg.mxu0
    %v410 = vpack.c.bf16 %v405, %v405
    %v411 = vld [vmem:[#allocation13 + $0x2] sm:$0x1]
    %v412 = vlaneseq
    %v413 = vshrl.u32 %v412, 7
    %v414 = vsub.s32 0, %v413
    %v415 = vrot.slane %v411, %v414
    %v432 = vunpack.c.l.b16 %v164
    %v433 = vunpack.c.l.b16 %v165
    %v434 = vunpack.c.l.b16 %v166
    %v435 = vunpack.c.l.b16 %v167
    %v436 = vunpack.c.l.b16 %v168
    %v437 = vunpack.c.l.b16 %v169
    %v438 = vunpack.c.l.b16 %v170
    %v439 = vunpack.c.l.b16 %v171
    %v440 = vunpack.c.l.b16 %v172
    %v441 = vunpack.c.l.b16 %v173
    %v442 = vunpack.c.l.b16 %v174
    %v443 = vunpack.c.l.b16 %v175
    %v444 = vunpack.c.l.b16 %v176
    %v445 = vunpack.c.l.b16 %v177
    %v446 = vunpack.c.l.b16 %v178
    %v447 = vunpack.c.l.b16 %v179
    %v448 = vpack.c.b16 %v433, %v432
    %v449 = vpack.c.b16 %v435, %v434
    %v450 = vpack.c.b16 %v437, %v436
    %v451 = vpack.c.b16 %v439, %v438
    %v452 = vpack.c.b16 %v441, %v440
    %v453 = vpack.c.b16 %v443, %v442
    %v454 = vpack.c.b16 %v445, %v444
    %v455 = vpack.c.b16 %v447, %v446
    %464 = vmatprep.subr.bf16.mxu0 0
    %465 = vmatpush1.bf16.msra.mxu0 %v455
    %466 = vmatprep.subr.bf16.mxu0 0
    %467 = vmatpush1.bf16.msra.mxu0 %v454
    %468 = vmatprep.subr.bf16.mxu0 0
    %469 = vmatpush1.bf16.msra.mxu0 %v453
    %470 = vmatprep.subr.bf16.mxu0 0
    %471 = vmatpush1.bf16.msra.mxu0 %v452
    %472 = vmatprep.subr.bf16.mxu0 0
    %473 = vmatpush1.bf16.msra.mxu0 %v451
    %474 = vmatprep.subr.bf16.mxu0 0
    %475 = vmatpush1.bf16.msra.mxu0 %v450
    %476 = vmatprep.subr.bf16.mxu0 0
    %477 = vmatpush1.bf16.msra.mxu0 %v449
    %478 = vmatprep.subr.bf16.mxu0 0
    %479 = vmatpush1.bf16.msra.mxu0 %v448
    %480 = vmatprep.subr.bf16.mxu0 0
    %481 = vmatpush2.bf16.msra.mxu0 0
    %482 = vmatprep.subr.bf16.mxu0 0
    %483 = vmatpush2.bf16.msra.mxu0 0
    %484 = vmatprep.subr.bf16.mxu0 0
    %485 = vmatpush2.bf16.msra.mxu0 0
    %486 = vmatprep.subr.bf16.mxu0 0
    %487 = vmatpush2.bf16.msra.mxu0 0
    %488 = vmatprep.subr.bf16.mxu0 0
    %489 = vmatpush2.bf16.msra.mxu0 0
    %490 = vmatprep.subr.bf16.mxu0 0
    %491 = vmatpush2.bf16.msra.mxu0 0
    %492 = vmatprep.subr.bf16.mxu0 0
    %493 = vmatpush2.bf16.msra.mxu0 0
    %494 = vmatprep.subr.bf16.mxu0 0
    %495 = vmatpush2.bf16.msra.mxu0 0
    %496 = vmatprep.mubr.bf16.mxu0 0
    %497 = vmatmul.mubr.bf16.gmra.mxu0 %v410
    %v498 = vpop.f32.mrf.mxu0
    %v499 = vadd.f32 %v415, %v498
    %v500 = vpop.f32.mrf.mxu0
    %v501 = vpop.f32.mrf.mxu0
    %v502 = vpop.f32.mrf.mxu0
    %503 = vdwg.mxu0
    %v504 = vmax.f32 %v499, 0.0
    %v505 = vpack.c.bf16 %v504, %v504
    %v506 = vld [vmem:[#allocation13 + $0x3] sm:$0x1]
    %v507 = vlaneseq
    %v508 = vshrl.u32 %v507, 7
    %v509 = vsub.s32 0, %v508
    %v510 = vrot.slane %v506, %v509
    %v527 = vunpack.c.l.b16 %v180
    %v528 = vunpack.c.l.b16 %v181
    %v529 = vunpack.c.l.b16 %v182
    %v530 = vunpack.c.l.b16 %v183
    %v531 = vunpack.c.l.b16 %v184
    %v532 = vunpack.c.l.b16 %v185
    %v533 = vunpack.c.l.b16 %v186
    %v534 = vunpack.c.l.b16 %v187
    %v535 = vunpack.c.l.b16 %v188
    %v536 = vunpack.c.l.b16 %v189
    %v537 = vunpack.c.l.b16 %v190
    %v538 = vunpack.c.l.b16 %v191
    %v539 = vunpack.c.l.b16 %v192
    %v540 = vunpack.c.l.b16 %v193
    %v541 = vunpack.c.l.b16 %v194
    %v542 = vunpack.c.l.b16 %v195
    %v543 = vpack.c.b16 %v528, %v527
    %v544 = vpack.c.b16 %v530, %v529
    %v545 = vpack.c.b16 %v532, %v531
    %v546 = vpack.c.b16 %v534, %v533
    %v547 = vpack.c.b16 %v536, %v535
    %v548 = vpack.c.b16 %v538, %v537
    %v549 = vpack.c.b16 %v540, %v539
    %v550 = vpack.c.b16 %v542, %v541
    %559 = vmatprep.subr.bf16.mxu0 0
    %560 = vmatpush1.bf16.msra.mxu0 %v550
    %561 = vmatprep.subr.bf16.mxu0 0
    %562 = vmatpush1.bf16.msra.mxu0 %v549
    %563 = vmatprep.subr.bf16.mxu0 0
    %564 = vmatpush1.bf16.msra.mxu0 %v548
    %565 = vmatprep.subr.bf16.mxu0 0
    %566 = vmatpush1.bf16.msra.mxu0 %v547
    %567 = vmatprep.subr.bf16.mxu0 0
    %568 = vmatpush1.bf16.msra.mxu0 %v546
    %569 = vmatprep.subr.bf16.mxu0 0
    %570 = vmatpush1.bf16.msra.mxu0 %v545
    %571 = vmatprep.subr.bf16.mxu0 0
    %572 = vmatpush1.bf16.msra.mxu0 %v544
    %573 = vmatprep.subr.bf16.mxu0 0
    %574 = vmatpush1.bf16.msra.mxu0 %v543
    %575 = vmatprep.subr.bf16.mxu0 0
    %576 = vmatpush2.bf16.msra.mxu0 0
    %577 = vmatprep.subr.bf16.mxu0 0
    %578 = vmatpush2.bf16.msra.mxu0 0
    %579 = vmatprep.subr.bf16.mxu0 0
    %580 = vmatpush2.bf16.msra.mxu0 0
    %581 = vmatprep.subr.bf16.mxu0 0
    %582 = vmatpush2.bf16.msra.mxu0 0
    %583 = vmatprep.subr.bf16.mxu0 0
    %584 = vmatpush2.bf16.msra.mxu0 0
    %585 = vmatprep.subr.bf16.mxu0 0
    %586 = vmatpush2.bf16.msra.mxu0 0
    %587 = vmatprep.subr.bf16.mxu0 0
    %588 = vmatpush2.bf16.msra.mxu0 0
    %589 = vmatprep.subr.bf16.mxu0 0
    %590 = vmatpush2.bf16.msra.mxu0 0
    %591 = vmatprep.mubr.bf16.mxu0 0
    %592 = vmatmul.mubr.bf16.gmra.mxu0 %v505
    %v593 = vpop.f32.mrf.mxu0
    %v594 = vadd.f32 %v510, %v593
    %v595 = vpop.f32.mrf.mxu0
    %v596 = vpop.f32.mrf.mxu0
    %v597 = vpop.f32.mrf.mxu0
    %598 = vdwg.mxu0
    %v599 = vmax.f32 %v594, 0.0
    %v600 = vld [vmem:[#allocation13 + $0x4] sm:$0x1]
    %v601 = vlaneseq
    %v602 = vshrl.u32 %v601, 7
    %v603 = vsub.s32 0, %v602
    %v604 = vrot.slane %v600, %v603
    %v605 = vmul.f32 %v599, %v604
    %606 = vadd.xlane.f32.xlu0 %v605
    %v607 = vpop.xlane.xlu0 %606
    %v608 = vld [vmem:[#allocation13 + $0x5] sm:$0x1]
    %v609 = vlaneseq
    %v610 = vshrl.u32 %v609, 7
    %v611 = vsub.s32 0, %v610
    %v612 = vrot.slane %v608, %v611
    %v613 = vadd.f32 %v607, %v612
    %v614 = vsub.f32 %v128, %v129
    %v615 = vmul.f32 %v614, %v614
    %v616 = vsel %vm210, %v615, 0.0
    %617 = vadd.xlane.f32.xlu0 %v616
    %v618 = vpop.xlane.xlu0 %617
    %v619 = vrsqrt.pop %v618
    %v620 = vmul.f32 %v618, %v619
    %vm621 = vcmp.eq.f32.partialorder %v618, inf
    %v622 = vsel %vm621, %v618, %v620
    %vm623 = vcmp.eq.f32.partialorder %v618, 0.0
    %v624 = vand.u32 %v618, 2147483648
    %v625 = vsel %vm623, %v624, %v622
    %v626 = vsub.f32 %v129, %v130
    %v627 = vmul.f32 %v626, %v626
    %v628 = vsel %vm210, %v627, 0.0
    %629 = vadd.xlane.f32.xlu0 %v628
    %v630 = vpop.xlane.xlu0 %629
    %v631 = vrsqrt.pop %v630
    %v632 = vmul.f32 %v630, %v631
    %vm633 = vcmp.eq.f32.partialorder %v630, inf
    %v634 = vsel %vm633, %v630, %v632
    %vm635 = vcmp.eq.f32.partialorder %v630, 0.0
    %v636 = vand.u32 %v630, 2147483648
    %v637 = vsel %vm635, %v636, %v634
    %v638 = vadd.f32 %v625, %v637
    %v639 = vsub.f32 %v130, %v131
    %v640 = vmul.f32 %v639, %v639
    %v641 = vsel %vm210, %v640, 0.0
    %642 = vadd.xlane.f32.xlu0 %v641
    %v643 = vpop.xlane.xlu0 %642
    %v644 = vrsqrt.pop %v643
    %v645 = vmul.f32 %v643, %v644
    %vm646 = vcmp.eq.f32.partialorder %v643, inf
    %v647 = vsel %vm646, %v643, %v645
    %vm648 = vcmp.eq.f32.partialorder %v643, 0.0
    %v649 = vand.u32 %v643, 2147483648
    %v650 = vsel %vm648, %v649, %v647
    %v651 = vadd.f32 %v638, %v650
    %v652 = vmul.f32 %v651, 0.33333334
    %v653 = vld [vmem:[%s5] sm:$0xff]
    %v654 = vld [vmem:[#allocation10] sm:$0xff]
    %v655 = vsub.f32 %v654, %v653
    %v656 = vmul.f32 %v655, %v655
    %v657 = vsel %vm210, %v656, 0.0
    %658 = vadd.xlane.f32.xlu0 %v657
    %v659 = vpop.xlane.xlu0 %658
    %661 = vrot.lane.b32.xlu0 %v653, 32
    %v662 = vpop.permute.xlu0 %661
    %v664 = vsub.f32 %v654, %v662
    %v665 = vmul.f32 %v664, %v664
    %667 = vrot.lane.b32.xlu0 %v665, 96
    %v668 = vpop.permute.xlu0 %667
    %v670 = vsel %vm210, %v668, 0.0
    %671 = vadd.xlane.f32.xlu0 %v670
    %v672 = vpop.xlane.xlu0 %671
    %v673 = vmin.f32 %v659, %v672
    %674 = vrot.lane.b32.xlu0 %v653, 64
    %v675 = vpop.permute.xlu0 %674
    %v677 = vsub.f32 %v654, %v675
    %v678 = vmul.f32 %v677, %v677
    %680 = vrot.lane.b32.xlu0 %v678, 64
    %v681 = vpop.permute.xlu0 %680
    %v683 = vsel %vm210, %v681, 0.0
    %684 = vadd.xlane.f32.xlu0 %v683
    %v685 = vpop.xlane.xlu0 %684
    %v686 = vmin.f32 %v673, %v685
    %687 = vrot.lane.b32.xlu0 %v653, 96
    %v688 = vpop.permute.xlu0 %687
    %v690 = vsub.f32 %v654, %v688
    %v691 = vmul.f32 %v690, %v690
    %693 = vrot.lane.b32.xlu0 %v691, 32
    %v694 = vpop.permute.xlu0 %693
    %v696 = vsel %vm210, %v694, 0.0
    %697 = vadd.xlane.f32.xlu0 %v696
    %v698 = vpop.xlane.xlu0 %697
    %v699 = vmin.f32 %v686, %v698
    %v700 = vmin.f32 %v699, 99980000.0
    %v701 = vrsqrt.pop %v700
    %v702 = vmul.f32 %v700, %v701
    %vm703 = vcmp.eq.f32.partialorder %v700, inf
    %v704 = vsel %vm703, %v700, %v702
    %vm705 = vcmp.eq.f32.partialorder %v700, 0.0
    %v706 = vand.u32 %v700, 2147483648
    %v707 = vsel %vm705, %v706, %v704
    %v708 = vrot.slane %v707, 4
    %v709 = vmin.f32 %v707, %v708
    %v710 = vrot.slane %v709, 2
    %v711 = vmin.f32 %v709, %v710
    %v712 = vrot.slane %v711, 1
    %v713 = vmin.f32 %v711, %v712
    %s714 = vtos %v713
    %v715 = vrot.slane %v707, 4
    %v716 = vmax.f32 %v707, %v715
    %v717 = vrot.slane %v716, 2
    %v718 = vmax.f32 %v716, %v717
    %v719 = vrot.slane %v718, 1
    %v720 = vmax.f32 %v718, %v719
    %s721 = vtos %v720
    %s722 = ssub.f32 %s721, %s714
    %p723 = scmp.eq.f32.partialorder %s722, 0.0
    %s724 = scalar_select %p723, 1.0, %s722
    %v725 = vstv %s714
    %v726 = vsub.f32 %v707, %v725
    %v727 = vstv %s724
    %v728 = vrcp.pop %v727
    %v729 = vmul.f32 %v726, %v728
    %v730 = vmul.f32 %v729, 6.0
    %v731 = vmul.f32 %v729, -6.0
    %v732 = vmul.f32 %v731, 1.442695
    %v733 = vpow.pop %v732
    %v734 = vmul.f32 %v730, %v733
    %v735 = vrot.slane %v652, 4
    %v736 = vmin.f32 %v652, %v735
    %v737 = vrot.slane %v736, 2
    %v738 = vmin.f32 %v736, %v737
    %v739 = vrot.slane %v738, 1
    %v740 = vmin.f32 %v738, %v739
    %s741 = vtos %v740
    %v742 = vrot.slane %v652, 4
    %v743 = vmax.f32 %v652, %v742
    %v744 = vrot.slane %v743, 2
    %v745 = vmax.f32 %v743, %v744
    %v746 = vrot.slane %v745, 1
    %v747 = vmax.f32 %v745, %v746
    %s748 = vtos %v747
    %s749 = ssub.f32 %s748, %s741
    %p750 = scmp.eq.f32.partialorder %s749, 0.0
    %s751 = scalar_select %p750, 1.0, %s749
    %v752 = vstv %s741
    %v753 = vsub.f32 %v652, %v752
    %v754 = vstv %s751
    %v755 = vrcp.pop %v754
    %v756 = vmul.f32 %v753, %v755
    %v757 = vmul.f32 %v734, %v756
    %v758 = vadd.f32 %v613, %v757
    %vm759 = vcmask 7168
    %760 = vst.msk [vmem:[%s9] sm:$0xff] %vm759, %v758
    // Predicated region
    $region70: #{tpu_custom_call.1} parent=1 // pred_check
      _
    $region71: #{tpu_custom_call.1} parent=1 // pred_check_branch
      %762 = sbr.rel (0) target = $region73
    $region72: #{tpu_custom_call.1} parent=1 // pred_region
      _
    $region73: #{tpu_custom_call.1} parent=1 // pred_fallthru
      _
    // Predicated region
    $region74: #{tpu_custom_call.1} parent=1 // pred_check
      _
    $region75: #{tpu_custom_call.1} parent=1 // pred_check_branch
      %764 = sbr.rel (0) target = $region77
    $region76: #{tpu_custom_call.1} parent=1 // pred_region
      _
    $region77: #{tpu_custom_call.1} parent=1 // pred_fallthru
      _
    %765 = vsyncpa [#allocation3], 1
    %766 = vsyncpa [#allocation5], 1
    %767 = vsyncpa [#allocation8], 1
    %768 = vsyncpa [#allocation11], 1
    %769 = vsyncpa [#allocation14], 1

</llo_original>
